<compile_context>
chip_gen: v7x
topology: tpu7x:2x2x1
jax: 0.10.0
libtpu: 0.0.40
codegen_flags: <defaults>
</compile_context>

<pallas_src>
import math
from functools import partial

import jax
import jax.numpy as jnp
from jax import lax
from jax.experimental import pallas as pl
from jax.experimental.pallas import tpu as pltpu


_VMEM_SPEC = pl.BlockSpec(memory_space=pltpu.MemorySpace.VMEM)


def _round_up(x, m):
    return ((x + m - 1) // m) * m


# ----------------------------------------------------------------------------
# Pallas kernels
# ----------------------------------------------------------------------------
def _mm_bias_kernel(a_ref, b_ref, bias_ref, o_ref, acc_ref):
    @pl.when(pl.program_id(2) == 0)
    def _():
        acc_ref[...] = jnp.zeros_like(acc_ref)

    acc_ref[...] += jnp.dot(a_ref[...], b_ref[...],
                            preferred_element_type=jnp.float32)

    @pl.when(pl.program_id(2) == pl.num_programs(2) - 1)
    def _():
        o_ref[...] = (acc_ref[...] + bias_ref[...]).astype(o_ref.dtype)


def matmul_bias(a, b, bias, tm=512, tn=256, tk=256):
    """(M,K) @ (K,Cout) + bias as a tiled Pallas matmul (bf16 MXU, f32 accumulation)."""
    M, K = a.shape
    N = b.shape[-1]
    tm = min(tm, _round_up(M, 16))
    tn = min(tn, _round_up(N, 128))
    tk = min(tk, _round_up(K, 128))
    Mp, Kp, Np = _round_up(M, tm), _round_up(K, tk), _round_up(N, tn)
    a_p = jnp.pad(a.astype(jnp.bfloat16), ((0, Mp - M), (0, Kp - K)))
    b_p = jnp.pad(b.astype(jnp.bfloat16), ((0, Kp - K), (0, Np - N)))
    bias_p = jnp.pad(bias.reshape(1, N).astype(jnp.float32), ((0, 0), (0, Np - N)))
    out = pl.pallas_call(
        _mm_bias_kernel,
        grid=(Mp // tm, Np // tn, Kp // tk),
        in_specs=[
            pl.BlockSpec((tm, tk), lambda i, j, k: (i, k)),
            pl.BlockSpec((tk, tn), lambda i, j, k: (k, j)),
            pl.BlockSpec((1, tn), lambda i, j, k: (0, j)),
        ],
        out_specs=pl.BlockSpec((tm, tn), lambda i, j, k: (i, j)),
        out_shape=jax.ShapeDtypeStruct((Mp, Np), jnp.float32),
        scratch_shapes=[pltpu.VMEM((tm, tn), jnp.float32)],
        compiler_params=pltpu.CompilerParams(
            dimension_semantics=("parallel", "parallel", "arbitrary")),
    )(a_p, b_p, bias_p)
    return out[:M, :N]


def _lutgen_kernel(codes_ref, wg_ref, bg_ref, basis_ref, w_ref, lut_ref):
    codes = codes_ref[...]                                            # (N, F)
    w = jnp.dot(codes, wg_ref[...], preferred_element_type=jnp.float32) + bg_ref[...]
    w_ref[...] = w                                                    # (N, R)
    # K = n_ranks is tiny -> weighted sum of basis rows on the VPU (skip the MXU).
    basis = basis_ref[...]                                            # (R, 3*V^4)
    acc = w[:, 0:1] * basis[0:1, :]
    for r in range(1, basis.shape[0]):
        acc = acc + w[:, r:r + 1] * basis[r:r + 1, :]
    lut_ref[...] = acc                                                # (N, 3*V^4)


def _ialut_kernel(ctx_ref, lut_ref, out_ref, *, n_vertices):
    """Factorized quadrilinear 4D-LUT lookup, channel-major / pixels-in-lanes.

    ctx_ref : (1, 4, tile)       rows (r, g, b, intensity), values in [0, 1]
    lut_ref : (1, 3*V^2, V^2)    rows (c, r, g), cols (b, i)
    out_ref : (1, 3, tile)
    """
    V = n_vertices
    V2 = V * V

    ctx = ctx_ref[0]                                                  # (4, tile)
    tile = ctx.shape[-1]
    x = jnp.clip(ctx, 0.0, 1.0) * (V - 1.0)
    x0f = jnp.clip(jnp.floor(x), 0.0, float(V - 2))
    f = x - x0f
    x0 = x0f.astype(jnp.int32)

    r0, g0, b0, i0 = (x0[d:d + 1, :] for d in range(4))               # (1, tile)
    fr, fg, fb, fi = (f[d:d + 1, :] for d in range(4))

    iota = lax.broadcasted_iota(jnp.int32, (V2, tile), 0)

    def pair_onehot(base, f_hi, f_lo):
        # Scatter the 4 bilinear weights of a vertex pair into a (V^2, tile) map.
        acc = jnp.zeros((V2, tile), jnp.float32)
        for d_hi in (0, 1):
            w_hi = f_hi if d_hi else 1.0 - f_hi
            for d_lo in (0, 1):
                w_lo = f_lo if d_lo else 1.0 - f_lo
                acc = acc + jnp.where(iota == base + d_hi * V + d_lo,
                                      w_hi * w_lo, 0.0)
        return acc

    a_rg = pair_onehot(r0 * V + g0, fr, fg)                           # (V^2, tile)
    b_bi = pair_onehot(b0 * V + i0, fb, fi)                           # (V^2, tile)

    # One lane-dense MXU matmul: (3*V^2, V^2) @ (V^2, tile) -> (3*V^2, tile).
    u = jnp.dot(lut_ref[0], b_bi, preferred_element_type=jnp.float32)

    # Per-channel sublane multiply-reduce against the (r, g) weights.
    outs = []
    for c in range(3):
        prod = a_rg * u[c * V2:(c + 1) * V2, :]
        outs.append(jnp.sum(prod, axis=0, keepdims=True))
    out_ref[0] = jnp.concatenate(outs, axis=0)                        # (3, tile)


def _reg_kernel(x_ref, sq_ref, mono_ref, *, n_vertices):
    """All 4 directional TV / monotonicity terms in one pass over one basis view.

    x_ref : (R*3*V^2, V^2); rows = (rank, c, r, g), cols = (b, i).
    Outputs: raw sums of d^2 and relu(-d) over all valid forward diffs.
    """
    V = n_vertices
    x = x_ref[...]

    def stats(d, mask=None):
        if mask is not None:
            d = jnp.where(mask, d, 0.0)
        return (jnp.sum(d * d, axis=(0, 1), keepdims=True),
                jnp.sum(jnp.maximum(-d, 0.0), axis=(0, 1), keepdims=True))

    # intensity axis: adjacent columns within a b-block
    d = x[:, 1:] - x[:, :-1]
    col = lax.broadcasted_iota(jnp.int32, d.shape, 1)
    s_i, m_i = stats(d, (col % V) != (V - 1))
    # blue axis: columns V apart (always valid)
    s_b, m_b = stats(x[:, V:] - x[:, :-V])
    # green axis: adjacent rows within a (rank, c, r) block
    d = x[1:, :] - x[:-1, :]
    row = lax.broadcasted_iota(jnp.int32, d.shape, 0)
    s_g, m_g = stats(d, (row % V) != (V - 1))
    # red axis: rows V apart within a (rank, c) block
    d = x[V:, :] - x[:-V, :]
    row = lax.broadcasted_iota(jnp.int32, d.shape, 0)
    s_r, m_r = stats(d, ((row // V) % V) != (V - 1))

    sq_ref[...] = s_i + s_b + s_g + s_r
    mono_ref[...] = m_i + m_b + m_g + m_r


# ----------------------------------------------------------------------------
# Wrappers around the kernels (JAX glue: reshapes, padding, im2col)
# ----------------------------------------------------------------------------
def conv3d(x, w, b, stride_s=1):
    """3x3x3 'same'-padded Conv3d (temporal stride 1, spatial stride `stride_s`).
    x: (N,T,H,W,Cin) channels-last; w: (3,3,3,Cin,Cout); b: (Cout,).
    Patch extraction (im2col) is JAX glue; the FLOPs run in the tiled Pallas matmul."""
    N, T, H, W, Cin = x.shape
    Cout = w.shape[-1]
    To = T
    Ho = (H + 2 - 3) // stride_s + 1
    Wo = (W + 2 - 3) // stride_s + 1
    xp = jnp.pad(x.astype(jnp.bfloat16), ((0, 0), (1, 1), (1, 1), (1, 1), (0, 0)))
    cols = []
    for kt in range(3):
        for kh in range(3):
            for kw in range(3):
                cols.append(xp[:, kt:kt + To,
                               kh:kh + stride_s * (Ho - 1) + 1:stride_s,
                               kw:kw + stride_s * (Wo - 1) + 1:stride_s, :])
    patches = jnp.stack(cols, axis=-2).reshape(N * To * Ho * Wo, 27 * Cin)
    y = matmul_bias(patches, w.reshape(27 * Cin, Cout), b)
    return y.reshape(N, To, Ho, Wo, Cout)


def intensity_conv3d(videos, w, b):
    """Cout=1 intensity head as a fused 81-tap weighted sum (no im2col, no 1-lane matmul).
    videos: (N,3,T,H,W); w: (3,3,3,3,1); b: (1,). Returns (N,1,T,H,W)."""
    N, C, T, H, W = videos.shape
    xp = jnp.pad(videos, ((0, 0), (0, 0), (1, 1), (1, 1), (1, 1)))
    acc = jnp.zeros((N, T, H, W), jnp.float32)
    for kt in range(3):
        for kh in range(3):
            for kw in range(3):
                for ci in range(C):
                    acc = acc + w[kt, kh, kw, ci, 0] * xp[:, ci, kt:kt + T,
                                                          kh:kh + H, kw:kw + W]
    return (acc + b[0])[:, None]


def instance_norm(x, gamma, beta, eps=1e-5):
    # x: (N,T,H,W,C); normalize over (T,H,W) per (N,C); affine.
    mean = x.mean(axis=(1, 2, 3), keepdims=True)
    var = x.var(axis=(1, 2, 3), keepdims=True)
    return (x - mean) / jnp.sqrt(var + eps) * gamma + beta


def adaptive_avg_pool3d(x, out_size):
    # PyTorch AdaptiveAvgPool3d semantics (works for out > in as well).
    N, T, H, W, C = x.shape
    oT, oH, oW = out_size

    def bins(insz, outsz):
        return [(int(math.floor(i * insz / outsz)),
                 int(math.ceil((i + 1) * insz / outsz))) for i in range(outsz)]

    rows = []
    for (t0, t1) in bins(T, oT):
        for (h0, h1) in bins(H, oH):
            for (w0, w1) in bins(W, oW):
                rows.append(x[:, t0:t1, h0:h1, w0:w1, :].mean(axis=(1, 2, 3)))
    return jnp.stack(rows, axis=1).reshape(N, oT, oH, oW, C)


def ialut_transform(context, luts, n_vertices, max_tile=2048):
    """context: (N, 4, P) channel-major in [0,1]; luts: (N, 3*V^2, V^2). -> (N, 3, P)."""
    N, _, P = context.shape
    V2 = n_vertices * n_vertices
    tile = min(max_tile, _round_up(P, 128))
    Pp = _round_up(P, tile)
    if Pp != P:
        context = jnp.pad(context, ((0, 0), (0, 0), (0, Pp - P)))
    out = pl.pallas_call(
        partial(_ialut_kernel, n_vertices=n_vertices),
        grid=(N, Pp // tile),
        in_specs=[
            pl.BlockSpec((1, 4, tile), lambda n, p: (n, 0, p)),
            pl.BlockSpec((1, 3 * V2, V2), lambda n, p: (n, 0, 0)),
        ],
        out_specs=pl.BlockSpec((1, 3, tile), lambda n, p: (n, 0, p)),
        out_shape=jax.ShapeDtypeStruct((N, 3, Pp), jnp.float32),
        compiler_params=pltpu.CompilerParams(
            dimension_semantics=("parallel", "parallel")),
    )(context.astype(jnp.float32), luts.astype(jnp.float32))
    return out[:, :, :P]


def lut_regularizations(basis, n_ranks, n_vertices, smooth_factor, mono_factor):
    """Mirrors LUT4DGenerator.regularizations: per-axis TV / monotonicity of the basis
    LUTs; each axis term is normalized by numel-after-rank-sum = 3*V^3*(V-1)."""
    V = n_vertices
    x = basis.reshape(n_ranks * 3 * V * V, V * V).astype(jnp.float32)
    sq, mono = pl.pallas_call(
        partial(_reg_kernel, n_vertices=V),
        out_shape=(jax.ShapeDtypeStruct((1, 1), jnp.float32),
                   jax.ShapeDtypeStruct((1, 1), jnp.float32)),
        in_specs=[_VMEM_SPEC],
        out_specs=(_VMEM_SPEC, _VMEM_SPEC),
    )(x)
    denom = 3 * (V ** 3) * (V - 1)
    return smooth_factor * sq[0, 0] / denom, mono_factor * mono[0, 0] / denom


# ----------------------------------------------------------------------------
# Model pieces
# ----------------------------------------------------------------------------
def light_backbone3d(params, videos, if_train, cfg):
    """videos: (N,3,T,H,W) -> (codes (N, out_channels), intensity_map (N,1,T,H,W))."""
    res = cfg["train_resolution"] if if_train else cfg["input_resolution"]
    N, C, T, H, W = videos.shape
    x = jnp.transpose(videos, (0, 2, 3, 4, 1))                       # channels-last
    if (H, W) != (res, res):
        x = jax.image.resize(x, (N, T, res, res, C), method="linear")
    for blk in params["backbone"]:
        x = conv3d(x, blk["w"], blk["b"], stride_s=2)
        if "gamma" in blk:
            x = instance_norm(x, blk["gamma"], blk["beta"])
        x = jax.nn.leaky_relu(x, 0.2)
    # TODO(synk): Dropout(p=0.5) skipped for determinism.
    x = adaptive_avg_pool3d(x, (1, 2, 2))
    codes = x.reshape(N, -1)                                         # (N, n_feats*4)
    intensity_map = jax.nn.sigmoid(
        intensity_conv3d(videos, params["intensity"]["w"], params["intensity"]["b"]))
    return codes, intensity_map


def denoise_forward(params, x):
    """x: (N,T,H,W,3) in [0,1]. Light residual 3D CNN (see TODO above)."""
    h = jax.nn.leaky_relu(conv3d(x, params["w1"], params["b1"]), 0.2)
    h = jax.nn.leaky_relu(conv3d(h, params["w2"], params["b2"]), 0.2)
    h = conv3d(h, params["w3"], params["b3"])
    return x + h


def ialut_llve_forward(params, videos, cfg, if_train=True):
    """Returns (outputs, clear_outputs, weights, reg_smoothness, reg_monotonicity)."""
    N, _, T, H, W = videos.shape
    V = cfg["n_vertices_4d"]
    R = cfg["n_ranks"]

    codes, intensity_map = light_backbone3d(params, videos, if_train, cfg)

    # LUT4DGenerator (Pallas)
    weights, luts_flat = pl.pallas_call(
        _lutgen_kernel,
        out_shape=(jax.ShapeDtypeStruct((N, R), jnp.float32),
                   jax.ShapeDtypeStruct((N, 3 * V ** 4), jnp.float32)),
        in_specs=[_VMEM_SPEC] * 4,
        out_specs=(_VMEM_SPEC, _VMEM_SPEC),
    )(codes.astype(jnp.float32), params["lutgen"]["wg"],
      params["lutgen"]["bg"], params["lutgen"]["basis"])
    luts = luts_flat.reshape(N, 3 * V * V, V * V)          # rows (c,r,g), cols (b,i)

    # context = cat(videos, intensity_map) along channels, channel-major pixels.
    P = T * H * W
    ctx = jnp.concatenate([videos.astype(jnp.float32), intensity_map],
                          axis=1).reshape(N, 4, P)

    out_flat = ialut_transform(ctx, luts, V)               # (N, 3, P) lane-dense
    outputs = out_flat.reshape(N, 3, T, H, W)              # already NCTHW

    outputs_clamp = jnp.clip(outputs, 0.0, 1.0)
    clear_cl = denoise_forward(params["denoise"],
                               jnp.transpose(outputs_clamp, (0, 2, 3, 4, 1)))
    clear_outputs = jnp.transpose(clear_cl, (0, 4, 1, 2, 3))

    if if_train:
        reg_s, reg_m = lut_regularizations(
            params["lutgen"]["basis"], R, V,
            cfg["smooth_factor"], cfg["monotonicity_factor"])
        reg_s = jnp.maximum(0.0, reg_s)
        reg_m = jnp.maximum(0.0, reg_m)
    else:
        reg_s = jnp.float32(0.0)
        reg_m = jnp.float32(0.0)
    return outputs, clear_outputs, weights, reg_s, reg_m


# ----------------------------------------------------------------------------
# Deterministic parameter init (mirrors the module's init_weights)
# ----------------------------------------------------------------------------
def _xavier_normal_conv(key, shape_kkkio):
    kt, kh, kw, cin, cout = shape_kkkio
    fan_in = cin * kt * kh * kw
    fan_out = cout * kt * kh * kw
    std = math.sqrt(2.0 / (fan_in + fan_out))
    return std * jax.random.normal(key, shape_kkkio, jnp.float32)


def init_params(key, cfg):
    nb = cfg["n_base_feats"]
    R = cfg["n_ranks"]
    V = cfg["n_vertices_4d"]
    keys = iter(jax.random.split(key, 32))
    params = {}

    # backbone: 5 stride-2 Conv3d blocks (xavier_normal weights, IN ~ N(1, 0.02))
    chans = [(3, nb, True)]
    c = nb
    for _ in range(3):
        chans.append((c, 2 * c, True))
        c *= 2
    chans.append((c, c, False))
    blocks = []
    for (cin, cout, norm) in chans:
        blk = {"w": _xavier_normal_conv(next(keys), (3, 3, 3, cin, cout)),
               "b": jnp.zeros((cout,), jnp.float32)}
        if norm:
            blk["gamma"] = 1.0 + 0.02 * jax.random.normal(next(keys), (cout,), jnp.float32)
            blk["beta"] = jnp.zeros((cout,), jnp.float32)
        blocks.append(blk)
    params["backbone"] = blocks
    out_channels = c * 4                                             # AdaptiveAvgPool3d((1,2,2))

    params["intensity"] = {"w": _xavier_normal_conv(next(keys), (3, 3, 3, 3, 1)),
                           "b": jnp.zeros((1,), jnp.float32)}

    # LUT4DGenerator: Linear(F->R) with bias init to ones; basis bank = identity LUT + zeros
    F = out_channels
    bound = 1.0 / math.sqrt(F)
    wg = jax.random.uniform(next(keys), (F, R), jnp.float32, -bound, bound)
    bg = jnp.ones((1, R), jnp.float32)
    grid4 = jnp.stack(jnp.meshgrid(*([jnp.arange(V, dtype=jnp.float32)] * 4),
                                   indexing="ij"), axis=0) / (V - 1)  # (4,V,V,V,V)
    identity = grid4[:3].reshape(1, 3 * V ** 4)                       # rgb identity, ignore intensity
    basis = jnp.concatenate([identity, jnp.zeros((R - 1, 3 * V ** 4), jnp.float32)], axis=0)
    params["lutgen"] = {"wg": wg, "bg": bg, "basis": basis}

    nf = 16
    params["denoise"] = {
        "w1": _xavier_normal_conv(next(keys), (3, 3, 3, 3, nf)), "b1": jnp.zeros((nf,), jnp.float32),
        "w2": _xavier_normal_conv(next(keys), (3, 3, 3, nf, nf)), "b2": jnp.zeros((nf,), jnp.float32),
        "w3": _xavier_normal_conv(next(keys), (3, 3, 3, nf, 3)), "b3": jnp.zeros((3,), jnp.float32),
    }
    return params, out_channels


# ----------------------------------------------------------------------------
if __name__ == "__main__":
    cfg = dict(input_resolution=16, train_resolution=16,
               n_ranks=3, n_vertices_4d=8, n_base_feats=8,
               smooth_factor=0.0, monotonicity_factor=10.0)

    root = jax.random.PRNGKey(0)
    pkey, dkey = jax.random.split(root)
    params, out_channels = init_params(pkey, cfg)

    # small demo input: (N, C, T, H, W) = (1, 3, 2, 16, 16), values in [0, 1]
    videos = jax.random.uniform(dkey, (1, 3, 2, 16, 16), jnp.float32)

    outs = ialut_llve_forward(params, videos, cfg, if_train=True)
    outs = jax.block_until_ready(outs)
    outputs, clear_outputs, weights, reg_s, reg_m = outs

    assert outputs.shape == (1, 3, 2, 16, 16)
    assert clear_outputs.shape == (1, 3, 2, 16, 16)
    assert weights.shape == (1, cfg["n_ranks"])
    assert jnp.isfinite(outputs).all() and jnp.isfinite(clear_outputs).all()
    assert jnp.isfinite(reg_s) and jnp.isfinite(reg_m)
    print("KERNEL_OK")
</pallas_src>

<mosaic_0001>
module attributes {stable_mosaic.version = 11 : i64} {
  func.func @_mm_bias_kernel(%arg0: i32, %arg1: i32, %arg2: i32, %arg3: memref<128x128xbf16, #tpu.memory_space<vmem>>, %arg4: memref<128x128xbf16, #tpu.memory_space<vmem>>, %arg5: memref<1x128xf32, #tpu.memory_space<vmem>>, %arg6: memref<128x128xf32, #tpu.memory_space<vmem>>, %arg7: memref<128x128xf32, #tpu.memory_space<vmem>>) attributes {dimension_semantics = [#tpu.dimension_semantics<parallel>, #tpu.dimension_semantics<parallel>, #tpu.dimension_semantics<arbitrary>], iteration_bounds = array<i64: 1, 1, 1>, scalar_prefetch = 0 : i64, scratch_operands = 1 : i64, tpu.core_type = #tpu.core_type<tc>, window_params = [{transform_indices = @transform_0, window_bounds = array<i64: 128, 128>}, {transform_indices = @transform_1, window_bounds = array<i64: 128, 128>}, {transform_indices = @transform_2, window_bounds = array<i64: 1, 128>}, {transform_indices = @transform_3, window_bounds = array<i64: 128, 128>}]} {
    %c0_i32 = arith.constant 0 : i32
    %0 = arith.cmpi eq, %arg2, %c0_i32 : i32
    %1 = arith.extui %0 : i1 to i32
    %c0_i32_0 = arith.constant 0 : i32
    %2 = arith.cmpi ne, %1, %c0_i32_0 : i32
    scf.if %2 {
      %cst_10 = arith.constant 0.000000e+00 : f32
      %12 = vector.broadcast %cst_10 : f32 to vector<128x128xf32>
      %c0_11 = arith.constant 0 : index
      %c0_12 = arith.constant 0 : index
      %13 = vector.load %arg7[%c0_11, %c0_12] : memref<128x128xf32, #tpu.memory_space<vmem>>, vector<128x128xf32>
      tpu.vector_store %arg7[%c0_11, %c0_12], %12 {strides = array<i32>} : memref<128x128xf32, #tpu.memory_space<vmem>>, vector<128x128xf32>,
    } else {
    }
    %c0 = arith.constant 0 : index
    %c0_1 = arith.constant 0 : index
    %3 = vector.load %arg7[%c0, %c0_1] : memref<128x128xf32, #tpu.memory_space<vmem>>, vector<128x128xf32>
    %c0_2 = arith.constant 0 : index
    %c0_3 = arith.constant 0 : index
    %4 = vector.load %arg3[%c0_2, %c0_3] : memref<128x128xbf16, #tpu.memory_space<vmem>>, vector<128x128xbf16>
    %c0_4 = arith.constant 0 : index
    %c0_5 = arith.constant 0 : index
    %5 = vector.load %arg4[%c0_4, %c0_5] : memref<128x128xbf16, #tpu.memory_space<vmem>>, vector<128x128xbf16>
    %cst = arith.constant dense<0.000000e+00> : vector<128x128xf32>
    %6 = tpu.matmul %4, %5, %cst {dimension_numbers = #tpu.dot_dimension_numbers<[1], [0], [0], [1], [0, 0, 1, 1], [], []>} : vector<128x128xbf16>, vector<128x128xbf16>, vector<128x128xf32> -> vector<128x128xf32>
    %7 = arith.addf %3, %6 : vector<128x128xf32>
    %c0_6 = arith.constant 0 : index
    %c0_7 = arith.constant 0 : index
    %8 = vector.load %arg7[%c0_6, %c0_7] : memref<128x128xf32, #tpu.memory_space<vmem>>, vector<128x128xf32>
    tpu.vector_store %arg7[%c0_6, %c0_7], %7 {strides = array<i32>} : memref<128x128xf32, #tpu.memory_space<vmem>>, vector<128x128xf32>,
    %c0_i32_8 = arith.constant 0 : i32
    %9 = arith.cmpi eq, %arg2, %c0_i32_8 : i32
    %10 = arith.extui %9 : i1 to i32
    %c0_i32_9 = arith.constant 0 : i32
    %11 = arith.cmpi ne, %10, %c0_i32_9 : i32
    scf.if %11 {
      %c0_10 = arith.constant 0 : index
      %c0_11 = arith.constant 0 : index
      %12 = vector.load %arg7[%c0_10, %c0_11] : memref<128x128xf32, #tpu.memory_space<vmem>>, vector<128x128xf32>
      %c0_12 = arith.constant 0 : index
      %c0_13 = arith.constant 0 : index
      %13 = vector.load %arg5[%c0_12, %c0_13] : memref<1x128xf32, #tpu.memory_space<vmem>>, vector<1x128xf32>
      %14 = vector.broadcast %13 : vector<1x128xf32> to vector<128x128xf32>
      %15 = arith.addf %12, %14 : vector<128x128xf32>
      %c0_14 = arith.constant 0 : index
      %c0_15 = arith.constant 0 : index
      %16 = vector.load %arg6[%c0_14, %c0_15] : memref<128x128xf32, #tpu.memory_space<vmem>>, vector<128x128xf32>
      tpu.vector_store %arg6[%c0_14, %c0_15], %15 {strides = array<i32>} : memref<128x128xf32, #tpu.memory_space<vmem>>, vector<128x128xf32>,
    } else {
    }
    return
  }
  func.func @transform_0(%arg0: i32, %arg1: i32, %arg2: i32) -> (i32, i32) {
    %c0_i32 = arith.constant 0 : i32
    return %arg0, %arg2 : i32, i32
  }
  func.func @transform_1(%arg0: i32, %arg1: i32, %arg2: i32) -> (i32, i32) {
    %c0_i32 = arith.constant 0 : i32
    return %arg2, %arg1 : i32, i32
  }
  func.func @transform_2(%arg0: i32, %arg1: i32, %arg2: i32) -> (i32, i32) {
    %c0_i32 = arith.constant 0 : i32
    %c0_i32_0 = arith.constant 0 : i32
    return %c0_i32, %arg1 : i32, i32
  }
  func.func @transform_3(%arg0: i32, %arg1: i32, %arg2: i32) -> (i32, i32) {
    %c0_i32 = arith.constant 0 : i32
    return %arg0, %arg1 : i32, i32
  }
}

</mosaic_0001>

<llo_original>
// kernel: tpu_custom_call.1
$region0: #{tpu_custom_call.1}
  #allocation0 [shape = 'u32[]', space=smem, size = 0x4, offset = 0x4, fixed_abs, tag = 'smem constant byte address 0x4 - core index']
  #allocation1 [shape = 'u32[144,128]{1,0:T(1,128)}', space=vmem, size = 0x12000, scoped, tag = 'internal scratch']
  #allocation2 [shape = 'f32[128,128]{1,0:T(8,128)}', space=vmem, size = 0x10000, scoped, tag = 'scratch operand']
  %s0 = inlined_call_operand.hbm [shape: bf16[128,128], index: 0, kind: input, shape index: {}]
  %s1 = inlined_call_operand.hbm [shape: bf16[128,128], index: 1, kind: input, shape index: {}]
  %s2 = inlined_call_operand.vmem [shape: f32[1,128], index: 2, kind: input, shape index: {}]
  %s3 = inlined_call_operand.hbm [shape: f32[128,128], index: 3, kind: output, shape index: {}]
  %s4 = sld [smem:[#allocation0]]
  $region38: #{tpu_custom_call.1} parent=0
    _
  %s6 = ssub.s32 1, %s4
  %s7 = scalar_select 0, %s6, %s4
  $region1: #{tpu_custom_call.1} parent=0
    #allocation3 [shape = 'u8[32768]{0}', space=vmem, size = 0x8000, scoped, tag = 'input window, operand 0, single buffered']
    #allocation4 [shape = 's32[1]{0}', space=sflag, size = 0x4, scoped, tag = 'scoped memory for tpu_custom_call.1']
    #allocation5 [shape = 's32[1]{0}', space=sflag, size = 0x4, scoped, tag = 'scoped memory for tpu_custom_call.1']
    #allocation6 [shape = 'u8[32768]{0}', space=vmem, size = 0x8000, scoped, tag = 'input window, operand 1, single buffered']
    #allocation7 [shape = 's32[1]{0}', space=sflag, size = 0x4, scoped, tag = 'scoped memory for tpu_custom_call.1']
    #allocation8 [shape = 'u8[65536]{0}', space=vmem, size = 0x10000, scoped, tag = 'output window, operand 0, single buffered']
    %8 = vsyncpa [#allocation4], 0
    %9 = vsyncpa [#allocation7], 0
    %10 = vsyncpa [#allocation5], 0
    // Predicated region
    $region2: #{tpu_custom_call.1} parent=1 // pred_check
      _
    $region3: #{tpu_custom_call.1} parent=1 // pred_check_branch
      %12 = sbr.rel (0) target = $region5
    $region4: #{tpu_custom_call.1} parent=1 // pred_region
      %s14 = ssub.s32 1024, 1024
      %15 = vsyncadd [#allocation4], %s14
      %s16 = sshll.u32 [#allocation3], 4
      %s17 = int_to_ptr.vmem [resolvable:$true] %s16
      %22 = dma.hbm_to_vmem [thread:$0]  %s0, 1024, %s17, [#allocation4], 64, 64, 4
    $region5: #{tpu_custom_call.1} parent=1 // pred_fallthru
      _
    // Predicated region
    $region6: #{tpu_custom_call.1} parent=1 // pred_check
      _
    $region7: #{tpu_custom_call.1} parent=1 // pred_check_branch
      %24 = sbr.rel (0) target = $region9
    $region8: #{tpu_custom_call.1} parent=1 // pred_region
      %s26 = ssub.s32 1024, 1024
      %27 = vsyncadd [#allocation7], %s26
      %s28 = sshll.u32 [#allocation6], 4
      %s29 = int_to_ptr.vmem [resolvable:$true] %s28
      %34 = dma.hbm_to_vmem [thread:$0]  %s1, 1024, %s29, [#allocation7], 64, 64, 4
    $region9: #{tpu_custom_call.1} parent=1 // pred_fallthru
      _
    // Predicated region
    $region10: #{tpu_custom_call.1} parent=1 // pred_check
      _
    $region11: #{tpu_custom_call.1} parent=1 // pred_check_branch
      %36 = sbr.rel (0) target = $region13
    $region12: #{tpu_custom_call.1} parent=1 // pred_region
      _
    $region13: #{tpu_custom_call.1} parent=1 // pred_fallthru
      _
    // Predicated region
    $region14: #{tpu_custom_call.1} parent=1 // pred_check
      _
    $region15: #{tpu_custom_call.1} parent=1 // pred_check_branch
      %38 = sbr.rel (0) target = $region17
    $region16: #{tpu_custom_call.1} parent=1 // pred_region
      %39 = dma.done [#allocation4], 1024
    $region17: #{tpu_custom_call.1} parent=1 // pred_fallthru
      _
    // Predicated region
    $region18: #{tpu_custom_call.1} parent=1 // pred_check
      _
    $region19: #{tpu_custom_call.1} parent=1 // pred_check_branch
      %41 = sbr.rel (0) target = $region21
    $region20: #{tpu_custom_call.1} parent=1 // pred_region
      %42 = dma.done [#allocation7], 1024
    $region21: #{tpu_custom_call.1} parent=1 // pred_fallthru
      _
    %p44 = scmp.eq.s32.totalorder 0, 0
    // Predicated region
    $region22: #{tpu_custom_call.1} parent=1 // pred_check
      %p45 = pneg %p44
    $region23: #{tpu_custom_call.1} parent=1 // pred_check_branch
      %47 = sbr.rel (%p45) target = $region25
    $region24: #{tpu_custom_call.1} parent=1 // pred_region
      %48 = vst [vmem:[#allocation2] sm:$0xff] 0.0
      %49 = vst [vmem:[#allocation2 + $0x8] sm:$0xff] 0.0
      %50 = vst [vmem:[#allocation2 + $0x10] sm:$0xff] 0.0
      %51 = vst [vmem:[#allocation2 + $0x18] sm:$0xff] 0.0
      %52 = vst [vmem:[#allocation2 + $0x20] sm:$0xff] 0.0
      %53 = vst [vmem:[#allocation2 + $0x28] sm:$0xff] 0.0
      %54 = vst [vmem:[#allocation2 + $0x30] sm:$0xff] 0.0
      %55 = vst [vmem:[#allocation2 + $0x38] sm:$0xff] 0.0
      %56 = vst [vmem:[#allocation2 + $0x40] sm:$0xff] 0.0
      %57 = vst [vmem:[#allocation2 + $0x48] sm:$0xff] 0.0
      %58 = vst [vmem:[#allocation2 + $0x50] sm:$0xff] 0.0
      %59 = vst [vmem:[#allocation2 + $0x58] sm:$0xff] 0.0
      %60 = vst [vmem:[#allocation2 + $0x60] sm:$0xff] 0.0
      %61 = vst [vmem:[#allocation2 + $0x68] sm:$0xff] 0.0
      %62 = vst [vmem:[#allocation2 + $0x70] sm:$0xff] 0.0
      %63 = vst [vmem:[#allocation2 + $0x78] sm:$0xff] 0.0
    $region25: #{tpu_custom_call.1} parent=1 // pred_fallthru
      _
    %v64 = vld [vmem:[#allocation2] sm:$0xff]
    %v65 = vld [vmem:[#allocation2 + $0x8] sm:$0xff]
    %v66 = vld [vmem:[#allocation2 + $0x10] sm:$0xff]
    %v67 = vld [vmem:[#allocation2 + $0x18] sm:$0xff]
    %v68 = vld [vmem:[#allocation2 + $0x20] sm:$0xff]
    %v69 = vld [vmem:[#allocation2 + $0x28] sm:$0xff]
    %v70 = vld [vmem:[#allocation2 + $0x30] sm:$0xff]
    %v71 = vld [vmem:[#allocation2 + $0x38] sm:$0xff]
    %v72 = vld [vmem:[#allocation2 + $0x40] sm:$0xff]
    %v73 = vld [vmem:[#allocation2 + $0x48] sm:$0xff]
    %v74 = vld [vmem:[#allocation2 + $0x50] sm:$0xff]
    %v75 = vld [vmem:[#allocation2 + $0x58] sm:$0xff]
    %v76 = vld [vmem:[#allocation2 + $0x60] sm:$0xff]
    %v77 = vld [vmem:[#allocation2 + $0x68] sm:$0xff]
    %v78 = vld [vmem:[#allocation2 + $0x70] sm:$0xff]
    %v79 = vld [vmem:[#allocation2 + $0x78] sm:$0xff]
    %v80 = vld [vmem:[#allocation3] sm:$0xf]
    %v81 = vld [vmem:[#allocation3 + $0x4] sm:$0xf]
    %v82 = vld [vmem:[#allocation3 + $0x8] sm:$0xf]
    %v83 = vld [vmem:[#allocation3 + $0xc] sm:$0xf]
    %v84 = vld [vmem:[#allocation3 + $0x10] sm:$0xf]
    %v85 = vld [vmem:[#allocation3 + $0x14] sm:$0xf]
    %v86 = vld [vmem:[#allocation3 + $0x18] sm:$0xf]
    %v87 = vld [vmem:[#allocation3 + $0x1c] sm:$0xf]
    %v88 = vld [vmem:[#allocation3 + $0x20] sm:$0xf]
    %v89 = vld [vmem:[#allocation3 + $0x24] sm:$0xf]
    %v90 = vld [vmem:[#allocation3 + $0x28] sm:$0xf]
    %v91 = vld [vmem:[#allocation3 + $0x2c] sm:$0xf]
    %v92 = vld [vmem:[#allocation3 + $0x30] sm:$0xf]
    %v93 = vld [vmem:[#allocation3 + $0x34] sm:$0xf]
    %v94 = vld [vmem:[#allocation3 + $0x38] sm:$0xf]
    %v95 = vld [vmem:[#allocation3 + $0x3c] sm:$0xf]
    %v96 = vld [vmem:[#allocation6] sm:$0xf]
    %v97 = vld [vmem:[#allocation6 + $0x4] sm:$0xf]
    %v98 = vld [vmem:[#allocation6 + $0x8] sm:$0xf]
    %v99 = vld [vmem:[#allocation6 + $0xc] sm:$0xf]
    %v100 = vld [vmem:[#allocation6 + $0x10] sm:$0xf]
    %v101 = vld [vmem:[#allocation6 + $0x14] sm:$0xf]
    %v102 = vld [vmem:[#allocation6 + $0x18] sm:$0xf]
    %v103 = vld [vmem:[#allocation6 + $0x1c] sm:$0xf]
    %v104 = vld [vmem:[#allocation6 + $0x20] sm:$0xf]
    %v105 = vld [vmem:[#allocation6 + $0x24] sm:$0xf]
    %v106 = vld [vmem:[#allocation6 + $0x28] sm:$0xf]
    %v107 = vld [vmem:[#allocation6 + $0x2c] sm:$0xf]
    %v108 = vld [vmem:[#allocation6 + $0x30] sm:$0xf]
    %v109 = vld [vmem:[#allocation6 + $0x34] sm:$0xf]
    %v110 = vld [vmem:[#allocation6 + $0x38] sm:$0xf]
    %v111 = vld [vmem:[#allocation6 + $0x3c] sm:$0xf]
    %v128 = vunpack.c.l.b16 %v80
    %v129 = vunpack.c.l.b16 %v81
    %v130 = vunpack.c.l.b16 %v82
    %v131 = vunpack.c.l.b16 %v83
    %v132 = vunpack.c.l.b16 %v84
    %v133 = vunpack.c.l.b16 %v85
    %v134 = vunpack.c.l.b16 %v86
    %v135 = vunpack.c.l.b16 %v87
    %v136 = vunpack.c.l.b16 %v88
    %v137 = vunpack.c.l.b16 %v89
    %v138 = vunpack.c.l.b16 %v90
    %v139 = vunpack.c.l.b16 %v91
    %v140 = vunpack.c.l.b16 %v92
    %v141 = vunpack.c.l.b16 %v93
    %v142 = vunpack.c.l.b16 %v94
    %v143 = vunpack.c.l.b16 %v95
    %v144 = vpack.c.b16 %v129, %v128
    %v145 = vpack.c.b16 %v131, %v130
    %v146 = vpack.c.b16 %v133, %v132
    %v147 = vpack.c.b16 %v135, %v134
    %v148 = vpack.c.b16 %v137, %v136
    %v149 = vpack.c.b16 %v139, %v138
    %v150 = vpack.c.b16 %v141, %v140
    %v151 = vpack.c.b16 %v143, %v142
    %v176 = vunpack.c.l.b16 %v96
    %v177 = vunpack.c.l.b16 %v97
    %v178 = vunpack.c.l.b16 %v98
    %v179 = vunpack.c.l.b16 %v99
    %v180 = vunpack.c.l.b16 %v100
    %v181 = vunpack.c.l.b16 %v101
    %v182 = vunpack.c.l.b16 %v102
    %v183 = vunpack.c.l.b16 %v103
    %v184 = vunpack.c.l.b16 %v104
    %v185 = vunpack.c.l.b16 %v105
    %v186 = vunpack.c.l.b16 %v106
    %v187 = vunpack.c.l.b16 %v107
    %v188 = vunpack.c.l.b16 %v108
    %v189 = vunpack.c.l.b16 %v109
    %v190 = vunpack.c.l.b16 %v110
    %v191 = vunpack.c.l.b16 %v111
    %v192 = vpack.c.b16 %v177, %v176
    %v193 = vpack.c.b16 %v179, %v178
    %v194 = vpack.c.b16 %v181, %v180
    %v195 = vpack.c.b16 %v183, %v182
    %v196 = vpack.c.b16 %v185, %v184
    %v197 = vpack.c.b16 %v187, %v186
    %v198 = vpack.c.b16 %v189, %v188
    %v199 = vpack.c.b16 %v191, %v190
    %208 = vmatprep.subr.bf16.mxu0 0
    %209 = vmatpush1.bf16.msra.mxu0 %v192
    %210 = vmatprep.subr.bf16.mxu0 0
    %211 = vmatpush1.bf16.msra.mxu0 %v193
    %212 = vmatprep.subr.bf16.mxu0 0
    %213 = vmatpush1.bf16.msra.mxu0 %v194
    %214 = vmatprep.subr.bf16.mxu0 0
    %215 = vmatpush1.bf16.msra.mxu0 %v195
    %216 = vmatprep.subr.bf16.mxu0 0
    %217 = vmatpush1.bf16.msra.mxu0 %v196
    %218 = vmatprep.subr.bf16.mxu0 0
    %219 = vmatpush1.bf16.msra.mxu0 %v197
    %220 = vmatprep.subr.bf16.mxu0 0
    %221 = vmatpush1.bf16.msra.mxu0 %v198
    %222 = vmatprep.subr.bf16.mxu0 0
    %223 = vmatpush1.bf16.msra.mxu0 %v199
    %224 = vmatprep.subr.bf16.mxu0 0
    %225 = vmatpush1.bf16.msra.mxu0 0
    %226 = vmatprep.subr.bf16.mxu0 0
    %227 = vmatpush1.bf16.msra.mxu0 0
    %228 = vmatprep.subr.bf16.mxu0 0
    %229 = vmatpush1.bf16.msra.mxu0 0
    %230 = vmatprep.subr.bf16.mxu0 0
    %231 = vmatpush1.bf16.msra.mxu0 0
    %232 = vmatprep.subr.bf16.mxu0 0
    %233 = vmatpush1.bf16.msra.mxu0 0
    %234 = vmatprep.subr.bf16.mxu0 0
    %235 = vmatpush1.bf16.msra.mxu0 0
    %236 = vmatprep.subr.bf16.mxu0 0
    %237 = vmatpush1.bf16.msra.mxu0 0
    %238 = vmatprep.subr.bf16.mxu0 0
    %239 = vmatpush1.bf16.msra.mxu0 0
    %240 = vmatprep.mubr.bf16.mxu0 0
    %241 = vmatmul.mubr.bf16.gmra.mrb[0].mxu0 %v144
    %v242 = vpop.f32.mrb[0].mxu0
    %v243 = vadd.f32 0.0, %v242
    %v244 = vpop.f32.mrb[0].mxu0
    %v245 = vpop.f32.mrb[0].mxu0
    %v246 = vadd.f32 0.0, %v245
    %v247 = vpop.f32.mrb[0].mxu0
    %248 = vmatprep.mubr.bf16.mxu0 0
    %249 = vmatmul.mubr.bf16.gmra.mrb[0].mxu0 %v145
    %v250 = vpop.f32.mrb[0].mxu0
    %v251 = vadd.f32 0.0, %v250
    %v252 = vpop.f32.mrb[0].mxu0
    %v253 = vpop.f32.mrb[0].mxu0
    %v254 = vadd.f32 0.0, %v253
    %v255 = vpop.f32.mrb[0].mxu0
    %256 = vmatprep.mubr.bf16.mxu0 0
    %257 = vmatmul.mubr.bf16.gmra.mrb[0].mxu0 %v146
    %v258 = vpop.f32.mrb[0].mxu0
    %v259 = vadd.f32 0.0, %v258
    %v260 = vpop.f32.mrb[0].mxu0
    %v261 = vpop.f32.mrb[0].mxu0
    %v262 = vadd.f32 0.0, %v261
    %v263 = vpop.f32.mrb[0].mxu0
    %264 = vmatprep.mubr.bf16.mxu0 0
    %265 = vmatmul.mubr.bf16.gmra.mrb[0].mxu0 %v147
    %v266 = vpop.f32.mrb[0].mxu0
    %v267 = vadd.f32 0.0, %v266
    %v268 = vpop.f32.mrb[0].mxu0
    %v269 = vpop.f32.mrb[0].mxu0
    %v270 = vadd.f32 0.0, %v269
    %v271 = vpop.f32.mrb[0].mxu0
    %272 = vmatprep.mubr.bf16.mxu0 0
    %273 = vmatmul.mubr.bf16.gmra.mrb[0].mxu0 %v148
    %v274 = vpop.f32.mrb[0].mxu0
    %v275 = vadd.f32 0.0, %v274
    %v276 = vpop.f32.mrb[0].mxu0
    %v277 = vpop.f32.mrb[0].mxu0
    %v278 = vadd.f32 0.0, %v277
    %v279 = vpop.f32.mrb[0].mxu0
    %280 = vmatprep.mubr.bf16.mxu0 0
    %281 = vmatmul.mubr.bf16.gmra.mrb[0].mxu0 %v149
    %v282 = vpop.f32.mrb[0].mxu0
    %v283 = vadd.f32 0.0, %v282
    %v284 = vpop.f32.mrb[0].mxu0
    %v285 = vpop.f32.mrb[0].mxu0
    %v286 = vadd.f32 0.0, %v285
    %v287 = vpop.f32.mrb[0].mxu0
    %288 = vmatprep.mubr.bf16.mxu0 0
    %289 = vmatmul.mubr.bf16.gmra.mrb[0].mxu0 %v150
    %v290 = vpop.f32.mrb[0].mxu0
    %v291 = vadd.f32 0.0, %v290
    %v292 = vpop.f32.mrb[0].mxu0
    %v293 = vpop.f32.mrb[0].mxu0
    %v294 = vadd.f32 0.0, %v293
    %v295 = vpop.f32.mrb[0].mxu0
    %296 = vmatprep.mubr.bf16.mxu0 0
    %297 = vmatmul.mubr.bf16.gmra.mrb[0].mxu0 %v151
    %v298 = vpop.f32.mrb[0].mxu0
    %v299 = vadd.f32 0.0, %v298
    %v300 = vpop.f32.mrb[0].mxu0
    %v301 = vpop.f32.mrb[0].mxu0
    %v302 = vadd.f32 0.0, %v301
    %v303 = vpop.f32.mrb[0].mxu0
    %304 = vdwg.mxu0
    %v305 = vadd.f32 %v64, %v243
    %v306 = vadd.f32 %v65, %v246
    %v307 = vadd.f32 %v66, %v251
    %v308 = vadd.f32 %v67, %v254
    %v309 = vadd.f32 %v68, %v259
    %v310 = vadd.f32 %v69, %v262
    %v311 = vadd.f32 %v70, %v267
    %v312 = vadd.f32 %v71, %v270
    %v313 = vadd.f32 %v72, %v275
    %v314 = vadd.f32 %v73, %v278
    %v315 = vadd.f32 %v74, %v283
    %v316 = vadd.f32 %v75, %v286
    %v317 = vadd.f32 %v76, %v291
    %v318 = vadd.f32 %v77, %v294
    %v319 = vadd.f32 %v78, %v299
    %v320 = vadd.f32 %v79, %v302
    %321 = vst [vmem:[#allocation2] sm:$0xff] %v305
    %322 = vst [vmem:[#allocation2 + $0x8] sm:$0xff] %v306
    %323 = vst [vmem:[#allocation2 + $0x10] sm:$0xff] %v307
    %324 = vst [vmem:[#allocation2 + $0x18] sm:$0xff] %v308
    %325 = vst [vmem:[#allocation2 + $0x20] sm:$0xff] %v309
    %326 = vst [vmem:[#allocation2 + $0x28] sm:$0xff] %v310
    %327 = vst [vmem:[#allocation2 + $0x30] sm:$0xff] %v311
    %328 = vst [vmem:[#allocation2 + $0x38] sm:$0xff] %v312
    %329 = vst [vmem:[#allocation2 + $0x40] sm:$0xff] %v313
    %330 = vst [vmem:[#allocation2 + $0x48] sm:$0xff] %v314
    %331 = vst [vmem:[#allocation2 + $0x50] sm:$0xff] %v315
    %332 = vst [vmem:[#allocation2 + $0x58] sm:$0xff] %v316
    %333 = vst [vmem:[#allocation2 + $0x60] sm:$0xff] %v317
    %334 = vst [vmem:[#allocation2 + $0x68] sm:$0xff] %v318
    %335 = vst [vmem:[#allocation2 + $0x70] sm:$0xff] %v319
    %336 = vst [vmem:[#allocation2 + $0x78] sm:$0xff] %v320
    // Predicated region
    $region26: #{tpu_custom_call.1} parent=1 // pred_check
      %p337 = pneg %p44
    $region27: #{tpu_custom_call.1} parent=1 // pred_check_branch
      %339 = sbr.rel (%p337) target = $region29
    $region28: #{tpu_custom_call.1} parent=1 // pred_region
      %v340 = vld [vmem:[#allocation2] sm:$0xff]
      %v341 = vld [vmem:[#allocation2 + $0x8] sm:$0xff]
      %v342 = vld [vmem:[#allocation2 + $0x10] sm:$0xff]
      %v343 = vld [vmem:[#allocation2 + $0x18] sm:$0xff]
      %v344 = vld [vmem:[#allocation2 + $0x20] sm:$0xff]
      %v345 = vld [vmem:[#allocation2 + $0x28] sm:$0xff]
      %v346 = vld [vmem:[#allocation2 + $0x30] sm:$0xff]
      %v347 = vld [vmem:[#allocation2 + $0x38] sm:$0xff]
      %v348 = vld [vmem:[#allocation2 + $0x40] sm:$0xff]
      %v349 = vld [vmem:[#allocation2 + $0x48] sm:$0xff]
      %v350 = vld [vmem:[#allocation2 + $0x50] sm:$0xff]
      %v351 = vld [vmem:[#allocation2 + $0x58] sm:$0xff]
      %v352 = vld [vmem:[#allocation2 + $0x60] sm:$0xff]
      %v353 = vld [vmem:[#allocation2 + $0x68] sm:$0xff]
      %v354 = vld [vmem:[#allocation2 + $0x70] sm:$0xff]
      %v355 = vld [vmem:[#allocation2 + $0x78] sm:$0xff]
      %v356 = vld [vmem:[%s2] sm:$0x1]
      %v358 = vlaneseq
      %v359 = vshrl.u32 %v358, 7
      %v360 = vsub.s32 0, %v359
      %v361 = vrot.slane %v356, %v360
      %v363 = vadd.f32 %v340, %v361
      %v364 = vadd.f32 %v341, %v361
      %v365 = vadd.f32 %v342, %v361
      %v366 = vadd.f32 %v343, %v361
      %v367 = vadd.f32 %v344, %v361
      %v368 = vadd.f32 %v345, %v361
      %v369 = vadd.f32 %v346, %v361
      %v370 = vadd.f32 %v347, %v361
      %v371 = vadd.f32 %v348, %v361
      %v372 = vadd.f32 %v349, %v361
      %v373 = vadd.f32 %v350, %v361
      %v374 = vadd.f32 %v351, %v361
      %v375 = vadd.f32 %v352, %v361
      %v376 = vadd.f32 %v353, %v361
      %v377 = vadd.f32 %v354, %v361
      %v378 = vadd.f32 %v355, %v361
      %379 = vst [vmem:[#allocation8] sm:$0xff] %v363
      %380 = vst [vmem:[#allocation8 + $0x8] sm:$0xff] %v364
      %381 = vst [vmem:[#allocation8 + $0x10] sm:$0xff] %v365
      %382 = vst [vmem:[#allocation8 + $0x18] sm:$0xff] %v366
      %383 = vst [vmem:[#allocation8 + $0x20] sm:$0xff] %v367
      %384 = vst [vmem:[#allocation8 + $0x28] sm:$0xff] %v368
      %385 = vst [vmem:[#allocation8 + $0x30] sm:$0xff] %v369
      %386 = vst [vmem:[#allocation8 + $0x38] sm:$0xff] %v370
      %387 = vst [vmem:[#allocation8 + $0x40] sm:$0xff] %v371
      %388 = vst [vmem:[#allocation8 + $0x48] sm:$0xff] %v372
      %389 = vst [vmem:[#allocation8 + $0x50] sm:$0xff] %v373
      %390 = vst [vmem:[#allocation8 + $0x58] sm:$0xff] %v374
      %391 = vst [vmem:[#allocation8 + $0x60] sm:$0xff] %v375
      %392 = vst [vmem:[#allocation8 + $0x68] sm:$0xff] %v376
      %393 = vst [vmem:[#allocation8 + $0x70] sm:$0xff] %v377
      %394 = vst [vmem:[#allocation8 + $0x78] sm:$0xff] %v378
    $region29: #{tpu_custom_call.1} parent=1 // pred_fallthru
      _
    // Predicated region
    $region30: #{tpu_custom_call.1} parent=1 // pred_check
      _
    $region31: #{tpu_custom_call.1} parent=1 // pred_check_branch
      %396 = sbr.rel (0) target = $region33
    $region32: #{tpu_custom_call.1} parent=1 // pred_region
      %s398 = ssub.s32 2048, 2048
      %399 = vsyncadd [#allocation5], %s398
      %s400 = sshll.u32 [#allocation8], 4
      %s401 = int_to_ptr.vmem [resolvable:$true] %s400
      %406 = dma.vmem_to_hbm [thread:$0]  %s401, 2048, %s3, [#allocation5], 128, 128, 8
    $region33: #{tpu_custom_call.1} parent=1 // pred_fallthru
      _
    // Predicated region
    $region34: #{tpu_custom_call.1} parent=1 // pred_check
      _
    $region35: #{tpu_custom_call.1} parent=1 // pred_check_branch
      %408 = sbr.rel (0) target = $region37
    $region36: #{tpu_custom_call.1} parent=1 // pred_region
      %409 = dma.done [#allocation5], 2048
    $region37: #{tpu_custom_call.1} parent=1 // pred_fallthru
      _
    %410 = vsyncpa [#allocation4], 1
    %411 = vsyncpa [#allocation7], 1
    %412 = vsyncpa [#allocation5], 1

</llo_original>
